<compile_context>
chip_gen: v7x
topology: tpu7x:2x2x1
jax: 0.10.0
libtpu: 0.0.40
codegen_flags: <defaults>
</compile_context>

<pallas_src>
import jax
import jax.numpy as jnp
from jax.experimental import pallas as pl
from jax.experimental.pallas import tpu as pltpu

_LANE = 128


def _round_up(v: int, m: int) -> int:
    return ((v + m - 1) // m) * m


def _cdiv(a: int, b: int) -> int:
    return (a + b - 1) // b


def _chip_config():
    """Generation-aware block budget / scoped-VMEM defaults / megacore flag."""
    kind = ""
    try:
        kind = jax.devices()[0].device_kind.lower()
    except Exception:
        pass
    if "v7" in kind:
        # 2 TCs, 3.2 TB/s HBM per TC, 64 MiB physical VMEM, 32 MiB scoped default.
        return dict(block_bytes=4 << 20, scoped_default=32 << 20,
                    physical=64 << 20, dual_tc=True)
    if "v6" in kind:
        return dict(block_bytes=2 << 20, scoped_default=32 << 20,
                    physical=128 << 20, dual_tc=False)
    # v5e / unknown: conservative (16 MiB scoped default).
    return dict(block_bytes=2 << 20, scoped_default=16 << 20,
                physical=128 << 20, dual_tc=False)


def _sublane_multiple(dtype) -> int:
    """8 for 32-bit, 16 for 16-bit, 32 for 8-bit dtypes (sublane packing)."""
    bits = jnp.dtype(dtype).itemsize * 8
    return max(8, 256 // bits)


def _swish_kernel(x_ref, o_ref):
    x = x_ref[...].astype(jnp.float32)
    # sigmoid(x) == 0.5 * tanh(0.5 * x) + 0.5  -> exactly one EUP transcendental.
    sig = 0.5 * jnp.tanh(0.5 * x) + 0.5
    o_ref[...] = (x * sig).astype(o_ref.dtype)


def _pick_rows_per_block(rows, bytes_per_row, sub, block_bytes, want_even_steps):
    """Row tile: sublane-aligned, ~block_bytes sized, >=2 steps when possible,
    and (on dual-TC chips) an even grid-step count."""
    if rows <= sub:
        return rows  # single full-extent block
    tr = max(sub, (block_bytes // max(bytes_per_row, 1)) // sub * sub)
    # Prefer >= 2 grid steps so the "parallel" axis can shard across 2 TCs.
    half = _round_up((rows + 1) // 2, sub)
    tr = min(tr, half)
    tr = min(tr, _round_up(rows, sub))
    tr = max(tr, sub)
    if want_even_steps:
        steps = _cdiv(rows, tr)
        while steps > 1 and steps % 2 == 1 and tr > sub:
            tr -= sub
            steps = _cdiv(rows, tr)
    return tr


def _run_swish_2d(slab, tr, cfg):
    rows, cols = slab.shape
    itemsize = jnp.dtype(slab.dtype).itemsize
    block_bytes = tr * cols * itemsize
    # in + out, double-buffered, plus slack for compiler-internal scratch.
    needed = 4 * block_bytes + (2 << 20)
    compiler_kwargs = {}
    if needed > cfg["scoped_default"]:
        compiler_kwargs["vmem_limit_bytes"] = min(cfg["physical"] - (16 << 20),
                                                  needed)
    grid = (_cdiv(rows, tr),)
    return pl.pallas_call(
        _swish_kernel,
        out_shape=jax.ShapeDtypeStruct((rows, cols), slab.dtype),
        grid_spec=pltpu.PrefetchScalarGridSpec(
            num_scalar_prefetch=0,
            grid=grid,
            in_specs=[pl.BlockSpec((tr, cols), lambda i: (i, 0))],
            out_specs=pl.BlockSpec((tr, cols), lambda i: (i, 0)),
        ),
        compiler_params=pltpu.CompilerParams(
            dimension_semantics=("parallel",),
            **compiler_kwargs,
        ),
    )(slab)


def swish(x: jax.Array) -> jax.Array:
    """Elementwise Swish via Pallas. Accepts any float shape/dtype; returns same."""
    orig_shape = x.shape
    orig_dtype = x.dtype
    total = x.size
    if total == 0:
        return x

    cfg = _chip_config()
    sub = _sublane_multiple(orig_dtype)
    itemsize = jnp.dtype(orig_dtype).itemsize

    if total % _LANE == 0:
        # Lane-dense slab: widest C in {4096..128} dividing total (free reshape).
        C = next(c for c in (4096, 2048, 1024, 512, 256, 128) if total % c == 0)
        rows = total // C
        slab = x.reshape(rows, C)
        tr = _pick_rows_per_block(rows, C * itemsize, sub,
                                  cfg["block_bytes"], cfg["dual_tc"])
        out = _run_swish_2d(slab, tr, cfg)
        return out.reshape(orig_shape)

    # Ragged total: view as (prod(leading), last_dim) — a FREE reshape, no host
    # pad or output slice.  Blocks are full-extent in the (non-128-multiple) last
    # dim; Pallas masks the partial edge tile in rows.  Lane-sparse stores only
    # cost VPU/vst slack, never extra HBM traffic.
    last = orig_shape[-1] if x.ndim >= 1 else 1
    bytes_per_row = last * itemsize
    if bytes_per_row <= cfg["block_bytes"] // 32:
        rows = total // last
        slab = x.reshape(rows, last)
        tr = _pick_rows_per_block(rows, bytes_per_row, sub,
                                  cfg["block_bytes"], cfg["dual_tc"])
        out = _run_swish_2d(slab, tr, cfg)
        return out.reshape(orig_shape)

    # Pathological ragged shape (huge non-128-aligned last dim): pad fallback.
    C = 1024
    padded_total = _round_up(total, C)
    flat = jnp.pad(x.reshape(-1), (0, padded_total - total))
    rows = padded_total // C
    slab = flat.reshape(rows, C)
    tr = _pick_rows_per_block(rows, C * itemsize, sub,
                              cfg["block_bytes"], cfg["dual_tc"])
    out = _run_swish_2d(slab, tr, cfg)
    return out.reshape(-1)[:total].reshape(orig_shape)


if __name__ == "__main__":
    key = jax.random.PRNGKey(0)
    k1, k2, k3, k4 = jax.random.split(key, 4)

    def ref_swish(x):
        xf = x.astype(jnp.float32)
        return (xf * jax.nn.sigmoid(xf)).astype(x.dtype)

    # 1) Primary shape: NCHW matching the PyTorch module (batch=2, ch=4, 16x16).
    x = jax.random.normal(k1, (2, 4, 16, 16), dtype=jnp.float32)
    y = jax.block_until_ready(swish(x))
    assert y.shape == x.shape and y.dtype == x.dtype
    assert jnp.allclose(y, ref_swish(x), atol=1e-5, rtol=1e-5)

    # 2) Multi-block grid path (128-divisible size).
    x2 = jax.random.normal(k2, (8, 64, 32, 32), dtype=jnp.float32)
    y2 = jax.block_until_ready(swish(x2))
    assert jnp.allclose(y2, ref_swish(x2), atol=1e-5, rtol=1e-5)

    # 3) Ragged size — zero-copy (no host pad / slice) path.
    x3 = jax.random.normal(k3, (3, 5, 7, 11), dtype=jnp.float32)
    y3 = jax.block_until_ready(swish(x3))
    assert y3.shape == x3.shape
    assert jnp.allclose(y3, ref_swish(x3), atol=1e-5, rtol=1e-5)

    # 4) bf16 path (sublane multiple 16; f32 internal compute).
    x4 = jax.random.normal(k4, (16, 64, 128), dtype=jnp.bfloat16)
    y4 = jax.block_until_ready(swish(x4))
    assert y4.dtype == jnp.bfloat16 and y4.shape == x4.shape
    assert jnp.allclose(y4.astype(jnp.float32), ref_swish(x4).astype(jnp.float32),
                        atol=1e-2, rtol=1e-2)

    print("KERNEL_OK")
</pallas_src>

<mosaic_0001>
module attributes {stable_mosaic.version = 11 : i64} {
  func.func @_swish_kernel(%arg0: i32, %arg1: memref<1x2048xf32, #tpu.memory_space<vmem>>, %arg2: memref<1x2048xf32, #tpu.memory_space<vmem>>) attributes {dimension_semantics = [#tpu.dimension_semantics<parallel>], iteration_bounds = array<i64: 1>, scalar_prefetch = 0 : i64, scratch_operands = 0 : i64, tpu.core_type = #tpu.core_type<tc>, window_params = [{transform_indices = @transform_0, window_bounds = array<i64: 1, 2048>}, {transform_indices = @transform_1, window_bounds = array<i64: 1, 2048>}]} {
    %c0 = arith.constant 0 : index
    %c0_0 = arith.constant 0 : index
    %0 = vector.load %arg1[%c0, %c0_0] : memref<1x2048xf32, #tpu.memory_space<vmem>>, vector<1x2048xf32>
    %cst = arith.constant 5.000000e-01 : f32
    %1 = vector.broadcast %cst : f32 to vector<1x2048xf32>
    %2 = arith.mulf %1, %0 : vector<1x2048xf32>
    %3 = math.tanh %2 : vector<1x2048xf32>
    %cst_1 = arith.constant 5.000000e-01 : f32
    %4 = vector.broadcast %cst_1 : f32 to vector<1x2048xf32>
    %5 = arith.mulf %4, %3 : vector<1x2048xf32>
    %cst_2 = arith.constant 5.000000e-01 : f32
    %6 = vector.broadcast %cst_2 : f32 to vector<1x2048xf32>
    %7 = arith.addf %5, %6 : vector<1x2048xf32>
    %8 = arith.mulf %0, %7 : vector<1x2048xf32>
    %c0_3 = arith.constant 0 : index
    %c0_4 = arith.constant 0 : index
    %9 = vector.load %arg2[%c0_3, %c0_4] : memref<1x2048xf32, #tpu.memory_space<vmem>>, vector<1x2048xf32>
    tpu.vector_store %arg2[%c0_3, %c0_4], %8 {strides = array<i32>} : memref<1x2048xf32, #tpu.memory_space<vmem>>, vector<1x2048xf32>,
    return
  }
  func.func @transform_0(%arg0: i32) -> (i32, i32) {
    %c0_i32 = arith.constant 0 : i32
    %c0_i32_0 = arith.constant 0 : i32
    return %arg0, %c0_i32 : i32, i32
  }
  func.func @transform_1(%arg0: i32) -> (i32, i32) {
    %c0_i32 = arith.constant 0 : i32
    %c0_i32_0 = arith.constant 0 : i32
    return %arg0, %c0_i32 : i32, i32
  }
}

</mosaic_0001>

<llo_original>
// kernel: tpu_custom_call.1
$region0: #{tpu_custom_call.1}
  #allocation0 [shape = 'u32[]', space=smem, size = 0x4, offset = 0x4, fixed_abs, tag = 'smem constant byte address 0x4 - core index']
  #allocation1 [shape = 'u32[144,128]{1,0:T(1,128)}', space=vmem, size = 0x12000, scoped, tag = 'internal scratch']
  %s0 = inlined_call_operand.hbm [shape: f32[1,2048], index: 0, kind: input, shape index: {}]
  %s1 = inlined_call_operand.hbm [shape: f32[1,2048], index: 1, kind: output, shape index: {}]
  %s2 = sld [smem:[#allocation0]]
  $region18: #{tpu_custom_call.1} parent=0
    _
  %s4 = ssub.s32 1, %s2
  %s5 = scalar_select 0, %s4, %s2
  $region1: #{tpu_custom_call.1} parent=0
    #allocation2 [shape = 'u8[8192]{0}', space=vmem, size = 0x2000, scoped, tag = 'input window, operand 0, single buffered']
    #allocation3 [shape = 's32[1]{0}', space=sflag, size = 0x4, scoped, tag = 'scoped memory for tpu_custom_call.1']
    #allocation4 [shape = 's32[1]{0}', space=sflag, size = 0x4, scoped, tag = 'scoped memory for tpu_custom_call.1']
    #allocation5 [shape = 'u8[8192]{0}', space=vmem, size = 0x2000, scoped, tag = 'output window, operand 0, single buffered']
    %6 = vsyncpa [#allocation3], 0
    %7 = vsyncpa [#allocation4], 0
    // Predicated region
    $region2: #{tpu_custom_call.1} parent=1 // pred_check
      _
    $region3: #{tpu_custom_call.1} parent=1 // pred_check_branch
      %9 = sbr.rel (0) target = $region5
    $region4: #{tpu_custom_call.1} parent=1 // pred_region
      %s11 = ssub.s32 256, 256
      %12 = vsyncadd [#allocation3], %s11
      %s14 = sshll.u32 [#allocation2], 4
      %s15 = int_to_ptr.vmem [resolvable:$true] %s14
      %17 = dma.hbm_to_vmem [thread:$0]  %s0, 256, %s15, [#allocation3]
    $region5: #{tpu_custom_call.1} parent=1 // pred_fallthru
      _
    // Predicated region
    $region6: #{tpu_custom_call.1} parent=1 // pred_check
      _
    $region7: #{tpu_custom_call.1} parent=1 // pred_check_branch
      %19 = sbr.rel (0) target = $region9
    $region8: #{tpu_custom_call.1} parent=1 // pred_region
      %20 = dma.done [#allocation3], 256
    $region9: #{tpu_custom_call.1} parent=1 // pred_fallthru
      _
    %v21 = vld [vmem:[#allocation2] sm:$0xff]
    %v22 = vld [vmem:[#allocation2 + $0x8] sm:$0xff]
    %v23 = vmul.f32 %v21, 0.5
    %v24 = vmul.f32 %v22, 0.5
    %v25 = vtanh.pop %v23
    %v26 = vtanh.pop %v24
    %v27 = vmul.f32 %v25, 0.5
    %v28 = vmul.f32 %v26, 0.5
    %v29 = vadd.f32 %v27, 0.5
    %v30 = vadd.f32 %v28, 0.5
    %v31 = vmul.f32 %v21, %v29
    %v32 = vmul.f32 %v22, %v30
    %33 = vst [vmem:[#allocation5] sm:$0xff] %v31
    %34 = vst [vmem:[#allocation5 + $0x8] sm:$0xff] %v32
    // Predicated region
    $region10: #{tpu_custom_call.1} parent=1 // pred_check
      _
    $region11: #{tpu_custom_call.1} parent=1 // pred_check_branch
      %36 = sbr.rel (0) target = $region13
    $region12: #{tpu_custom_call.1} parent=1 // pred_region
      %s38 = ssub.s32 256, 256
      %39 = vsyncadd [#allocation4], %s38
      %s41 = sshll.u32 [#allocation5], 4
      %s42 = int_to_ptr.vmem [resolvable:$true] %s41
      %44 = dma.vmem_to_hbm [thread:$0]  %s42, 256, %s1, [#allocation4]
    $region13: #{tpu_custom_call.1} parent=1 // pred_fallthru
      _
    // Predicated region
    $region14: #{tpu_custom_call.1} parent=1 // pred_check
      _
    $region15: #{tpu_custom_call.1} parent=1 // pred_check_branch
      %46 = sbr.rel (0) target = $region17
    $region16: #{tpu_custom_call.1} parent=1 // pred_region
      %47 = dma.done [#allocation4], 256
    $region17: #{tpu_custom_call.1} parent=1 // pred_fallthru
      _
    %48 = vsyncpa [#allocation3], 1
    %49 = vsyncpa [#allocation4], 1

</llo_original>
